<compile_context>
chip_gen: v7x
topology: tpu7x:2x2x1
jax: 0.10.0
libtpu: 0.0.40
codegen_flags: <defaults>
</compile_context>

<pallas_src>
import functools
import math

import jax
import jax.numpy as jnp
from jax.experimental import pallas as pl
from jax.experimental.pallas import tpu as pltpu


def _causal_conv1d_kernel(*refs, B, C_in, C_out, K, dilation, P, TL, LC,
                          has_halo):
    # refs (in order):
    #   x_ref    : (B*C_in, TL)   current time tile (time on lanes, NCW kept)
    #   halo_ref : (B*C_in, LC)   [only if has_halo] last LC samples of the
    #                             previous tile, re-read from HBM so tiles
    #                             stay independent ("parallel" grid axis)
    #   wb_ref   : (C_out, K*C_in + 1)  wb[o, j*C_in + c] = weight[o, c, j],
    #                                   wb[o, K*C_in]     = bias[o]
    #   o_ref    : (B*C_out, TL)
    if has_halo:
        x_ref, halo_ref, wb_ref, o_ref = refs
    else:
        x_ref, wb_ref, o_ref = refs

    f32 = jnp.float32
    R_in = B * C_in

    # Hoisted once per grid step (tiny): per-tap weight columns + bias column.
    w_cols = [wb_ref[:, i:i + 1].astype(f32) for i in range(K * C_in)]  # (C_out,1) each
    b_col = wb_ref[:, K * C_in:K * C_in + 1].astype(f32)                # (C_out,1)

    # Left causal halo (last P samples before this tile).  Zeros for tile 0.
    if P > 0:
        if has_halo:
            tail = halo_ref[:, LC - P:].astype(f32)                     # (R_in, P)
            halo = tail * (pl.program_id(0) > 0).astype(f32)            # zero on tile 0
        else:
            halo = jnp.zeros((R_in, P), f32)

    # Chunked over the lane (time) axis: each chunk's inputs/accumulator are
    # dead before the next chunk starts, so vreg pressure is bounded by LC,
    # not TL.  All offsets are static Python ints (no dynamic lane slices).
    for s in range(0, TL, LC):
        cw = min(LC, TL - s)                                            # chunk width
        if s == 0:
            cur = x_ref[:, 0:cw].astype(f32)
            xw = jnp.concatenate([halo, cur], axis=-1) if P > 0 else cur
        else:
            xw = x_ref[:, s - P:s + cw].astype(f32)                     # (R_in, cw+P)

        for b in range(B):
            acc = jnp.zeros((C_out, cw), f32)
            for j in range(K):                                          # small static unroll
                lo = j * dilation
                for c in range(C_in):
                    row = xw[b * C_in + c:b * C_in + c + 1, lo:lo + cw]  # (1, cw)
                    acc = acc + w_cols[j * C_in + c] * row               # VPU broadcast MAC
            o_ref[b * C_out:(b + 1) * C_out, s:s + cw] = (
                acc + b_col).astype(o_ref.dtype)


def causal_conv1d(x, weight, bias, *, dilation=1, max_l_tile=16384,
                  lane_chunk=1024):
    """Causal 1D convolution, PyTorch layouts.

    Args:
      x:      (B, C_in, L)       NCW input.
      weight: (C_out, C_in, K)   PyTorch Conv1d weight.
      bias:   (C_out,)
      dilation:    conv dilation.
      max_l_tile:  per-grid-step time tile (lanes); tune per generation.
      lane_chunk:  in-kernel compute chunk (lanes); bounds vreg live ranges.
    Returns:
      (B, C_out, L)
    """
    B, C_in, L = x.shape
    C_out, C_in_w, K = weight.shape
    assert C_in_w == C_in, (C_in_w, C_in)
    P = (K - 1) * dilation

    # Fold batch into the sublane (channel) axis: free contiguous reshapes.
    R_in, R_out = B * C_in, B * C_out
    x2d = x.reshape(R_in, L)

    # Pack weight + bias into one small lane-dense 2D block.
    w2 = jnp.transpose(weight, (0, 2, 1)).reshape(C_out, K * C_in)
    wb = jnp.concatenate([w2, bias.reshape(C_out, 1)], axis=1)   # (C_out, K*C_in+1)

    # Lane chunk: multiple of 128, and large enough to hold the causal halo.
    LC = max(128, (lane_chunk // 128) * 128)
    if P > LC:
        LC = pl.cdiv(P, 128) * 128

    if L <= max(max_l_tile, LC):
        TL, n_l, has_halo = L, 1, False            # single tile; halo = zeros
    else:
        TL = max(LC, (max_l_tile // LC) * LC)      # multiple of LC (and of 128)
        n_l = pl.cdiv(L, TL)
        has_halo = P > 0
        assert P <= LC, "causal halo must fit inside one lane chunk"

    kernel = functools.partial(
        _causal_conv1d_kernel,
        B=B, C_in=C_in, C_out=C_out, K=K, dilation=dilation,
        P=P, TL=TL, LC=LC, has_halo=has_halo)

    in_specs = [pl.BlockSpec((R_in, TL), lambda l: (0, l))]
    inputs = [x2d]
    if has_halo:
        nb = TL // LC   # LC-wide halo blocks per time tile
        # Overlapping re-read of the previous tile's tail; tile 0's read is
        # discarded in-kernel (zero halo), so clamping the index to 0 is safe.
        in_specs.append(pl.BlockSpec(
            (R_in, LC), lambda l, _nb=nb: (0, jnp.maximum(l * _nb - 1, 0))))
        inputs.append(x2d)                         # same array, halo window
    in_specs.append(pl.BlockSpec((C_out, K * C_in + 1), lambda l: (0, 0)))
    inputs.append(wb)

    out2d = pl.pallas_call(
        kernel,
        out_shape=jax.ShapeDtypeStruct((R_out, L), x.dtype),
        grid_spec=pltpu.PrefetchScalarGridSpec(
            num_scalar_prefetch=0,
            grid=(n_l,),
            in_specs=in_specs,
            out_specs=pl.BlockSpec((R_out, TL), lambda l: (0, l)),
        ),
        compiler_params=pltpu.CompilerParams(
            # Tiles are independent (halo re-read, not carried), so the single
            # time axis can be parallel -> both v7x TensorCores get work.
            dimension_semantics=("parallel",),
        ),
    )(*inputs)

    return out2d.reshape(B, C_out, L)


def _reference(x, weight, bias, dilation):
    """Plain-JAX reference of the same causal conv (for sanity checking)."""
    B, C_in, L = x.shape
    C_out, _, K = weight.shape
    P = (K - 1) * dilation
    x_pad = jnp.pad(x, ((0, 0), (0, 0), (P, 0)))          # (B, C_in, L+P)
    out = jnp.zeros((B, C_out, L), jnp.float32)
    for j in range(K):
        xs = jax.lax.dynamic_slice_in_dim(x_pad, j * dilation, L, axis=2)
        out = out + jnp.einsum("bcl,oc->bol", xs.astype(jnp.float32),
                               weight[:, :, j].astype(jnp.float32))
    return (out + bias[None, :, None]).astype(x.dtype)


def _run_case(key, B, C_in, C_out, K, dilation, L, **kw):
    kx, kw_, kb = jax.random.split(key, 3)
    fan_in = C_in * K
    bound = 1.0 / math.sqrt(fan_in)
    weight = jax.random.uniform(kw_, (C_out, C_in, K), jnp.float32, -bound, bound)
    bias = jax.random.uniform(kb, (C_out,), jnp.float32, -bound, bound)
    x = jax.random.normal(kx, (B, C_in, L), jnp.float32)

    out = causal_conv1d(x, weight, bias, dilation=dilation, **kw)
    out = jax.block_until_ready(out)

    ref = _reference(x, weight, bias, dilation)
    assert out.shape == (B, C_out, L), out.shape
    assert jnp.allclose(out, ref, atol=1e-5, rtol=1e-5), "mismatch vs reference"


if __name__ == "__main__":
    key = jax.random.PRNGKey(0)
    k0, k1, k2 = jax.random.split(key, 3)

    # Module config consistent with the forward pass (small shapes).
    _run_case(k0, B=2, C_in=4, C_out=8, K=3, dilation=2, L=16)
    # Different kernel size / dilation / channel counts.
    _run_case(k1, B=2, C_in=3, C_out=8, K=2, dilation=1, L=16)
    # Exercise the multi-tile path: halo re-read, lane chunking, ragged last
    # tile (L not a multiple of the time tile) — still small shapes.
    _run_case(k2, B=2, C_in=4, C_out=8, K=3, dilation=2, L=700,
              max_l_tile=256, lane_chunk=128)

    print("KERNEL_OK")
</pallas_src>

<mosaic_0001>
module attributes {stable_mosaic.version = 11 : i64} {
  func.func @_causal_conv1d_kernel(%arg0: i32, %arg1: memref<8x16xf32, #tpu.memory_space<vmem>>, %arg2: memref<8x13xf32, #tpu.memory_space<vmem>>, %arg3: memref<16x16xf32, #tpu.memory_space<vmem>>) attributes {dimension_semantics = [#tpu.dimension_semantics<parallel>], iteration_bounds = array<i64: 1>, scalar_prefetch = 0 : i64, scratch_operands = 0 : i64, tpu.core_type = #tpu.core_type<tc>, window_params = [{transform_indices = @transform_0, window_bounds = array<i64: 8, 16>}, {pipeline_mode = #tpu.pipeline_mode<synchronous>, transform_indices = @transform_1, window_bounds = array<i64: 8, 13>}, {transform_indices = @transform_2, window_bounds = array<i64: 16, 16>}]} {
    %c0 = arith.constant 0 : index
    %c0_0 = arith.constant 0 : index
    %0 = vector.load %arg2[%c0, %c0_0] : memref<8x13xf32, #tpu.memory_space<vmem>>, vector<8x1xf32>
    %c0_1 = arith.constant 0 : index
    %c1 = arith.constant 1 : index
    %1 = vector.load %arg2[%c0_1, %c1] : memref<8x13xf32, #tpu.memory_space<vmem>>, vector<8x1xf32>
    %c0_2 = arith.constant 0 : index
    %c2 = arith.constant 2 : index
    %2 = vector.load %arg2[%c0_2, %c2] : memref<8x13xf32, #tpu.memory_space<vmem>>, vector<8x1xf32>
    %c0_3 = arith.constant 0 : index
    %c3 = arith.constant 3 : index
    %3 = vector.load %arg2[%c0_3, %c3] : memref<8x13xf32, #tpu.memory_space<vmem>>, vector<8x1xf32>
    %c0_4 = arith.constant 0 : index
    %c4 = arith.constant 4 : index
    %4 = vector.load %arg2[%c0_4, %c4] : memref<8x13xf32, #tpu.memory_space<vmem>>, vector<8x1xf32>
    %c0_5 = arith.constant 0 : index
    %c5 = arith.constant 5 : index
    %5 = vector.load %arg2[%c0_5, %c5] : memref<8x13xf32, #tpu.memory_space<vmem>>, vector<8x1xf32>
    %c0_6 = arith.constant 0 : index
    %c6 = arith.constant 6 : index
    %6 = vector.load %arg2[%c0_6, %c6] : memref<8x13xf32, #tpu.memory_space<vmem>>, vector<8x1xf32>
    %c0_7 = arith.constant 0 : index
    %c7 = arith.constant 7 : index
    %7 = vector.load %arg2[%c0_7, %c7] : memref<8x13xf32, #tpu.memory_space<vmem>>, vector<8x1xf32>
    %c0_8 = arith.constant 0 : index
    %c8 = arith.constant 8 : index
    %8 = vector.load %arg2[%c0_8, %c8] : memref<8x13xf32, #tpu.memory_space<vmem>>, vector<8x1xf32>
    %c0_9 = arith.constant 0 : index
    %c9 = arith.constant 9 : index
    %9 = vector.load %arg2[%c0_9, %c9] : memref<8x13xf32, #tpu.memory_space<vmem>>, vector<8x1xf32>
    %c0_10 = arith.constant 0 : index
    %c10 = arith.constant 10 : index
    %10 = vector.load %arg2[%c0_10, %c10] : memref<8x13xf32, #tpu.memory_space<vmem>>, vector<8x1xf32>
    %c0_11 = arith.constant 0 : index
    %c11 = arith.constant 11 : index
    %11 = vector.load %arg2[%c0_11, %c11] : memref<8x13xf32, #tpu.memory_space<vmem>>, vector<8x1xf32>
    %c0_12 = arith.constant 0 : index
    %c12 = arith.constant 12 : index
    %12 = vector.load %arg2[%c0_12, %c12] : memref<8x13xf32, #tpu.memory_space<vmem>>, vector<8x1xf32>
    %cst = arith.constant 0.000000e+00 : f32
    %13 = vector.broadcast %cst : f32 to vector<8x4xf32>
    %c0_13 = arith.constant 0 : index
    %c0_14 = arith.constant 0 : index
    %14 = vector.load %arg1[%c0_13, %c0_14] : memref<8x16xf32, #tpu.memory_space<vmem>>, vector<8x16xf32>
    %15 = tpu.concatenate %13, %14 in 1 : vector<8x4xf32>, vector<8x16xf32> -> vector<8x20xf32>
    %cst_15 = arith.constant 0.000000e+00 : f32
    %16 = vector.broadcast %cst_15 : f32 to vector<8x16xf32>
    %17 = vector.extract_strided_slice %15 {offsets = [0, 0], sizes = [1, 16], strides = [1, 1]} : vector<8x20xf32> to vector<1x16xf32>
    %18 = vector.broadcast %0 : vector<8x1xf32> to vector<8x16xf32>
    %19 = vector.broadcast %17 : vector<1x16xf32> to vector<8x16xf32>
    %20 = arith.mulf %18, %19 : vector<8x16xf32>
    %21 = arith.addf %16, %20 : vector<8x16xf32>
    %22 = vector.extract_strided_slice %15 {offsets = [1, 0], sizes = [1, 16], strides = [1, 1]} : vector<8x20xf32> to vector<1x16xf32>
    %23 = vector.broadcast %1 : vector<8x1xf32> to vector<8x16xf32>
    %24 = vector.broadcast %22 : vector<1x16xf32> to vector<8x16xf32>
    %25 = arith.mulf %23, %24 : vector<8x16xf32>
    %26 = arith.addf %21, %25 : vector<8x16xf32>
    %27 = vector.extract_strided_slice %15 {offsets = [2, 0], sizes = [1, 16], strides = [1, 1]} : vector<8x20xf32> to vector<1x16xf32>
    %28 = vector.broadcast %2 : vector<8x1xf32> to vector<8x16xf32>
    %29 = vector.broadcast %27 : vector<1x16xf32> to vector<8x16xf32>
    %30 = arith.mulf %28, %29 : vector<8x16xf32>
    %31 = arith.addf %26, %30 : vector<8x16xf32>
    %32 = vector.extract_strided_slice %15 {offsets = [3, 0], sizes = [1, 16], strides = [1, 1]} : vector<8x20xf32> to vector<1x16xf32>
    %33 = vector.broadcast %3 : vector<8x1xf32> to vector<8x16xf32>
    %34 = vector.broadcast %32 : vector<1x16xf32> to vector<8x16xf32>
    %35 = arith.mulf %33, %34 : vector<8x16xf32>
    %36 = arith.addf %31, %35 : vector<8x16xf32>
    %37 = vector.extract_strided_slice %15 {offsets = [0, 2], sizes = [1, 16], strides = [1, 1]} : vector<8x20xf32> to vector<1x16xf32>
    %38 = vector.broadcast %4 : vector<8x1xf32> to vector<8x16xf32>
    %39 = vector.broadcast %37 : vector<1x16xf32> to vector<8x16xf32>
    %40 = arith.mulf %38, %39 : vector<8x16xf32>
    %41 = arith.addf %36, %40 : vector<8x16xf32>
    %42 = vector.extract_strided_slice %15 {offsets = [1, 2], sizes = [1, 16], strides = [1, 1]} : vector<8x20xf32> to vector<1x16xf32>
    %43 = vector.broadcast %5 : vector<8x1xf32> to vector<8x16xf32>
    %44 = vector.broadcast %42 : vector<1x16xf32> to vector<8x16xf32>
    %45 = arith.mulf %43, %44 : vector<8x16xf32>
    %46 = arith.addf %41, %45 : vector<8x16xf32>
    %47 = vector.extract_strided_slice %15 {offsets = [2, 2], sizes = [1, 16], strides = [1, 1]} : vector<8x20xf32> to vector<1x16xf32>
    %48 = vector.broadcast %6 : vector<8x1xf32> to vector<8x16xf32>
    %49 = vector.broadcast %47 : vector<1x16xf32> to vector<8x16xf32>
    %50 = arith.mulf %48, %49 : vector<8x16xf32>
    %51 = arith.addf %46, %50 : vector<8x16xf32>
    %52 = vector.extract_strided_slice %15 {offsets = [3, 2], sizes = [1, 16], strides = [1, 1]} : vector<8x20xf32> to vector<1x16xf32>
    %53 = vector.broadcast %7 : vector<8x1xf32> to vector<8x16xf32>
    %54 = vector.broadcast %52 : vector<1x16xf32> to vector<8x16xf32>
    %55 = arith.mulf %53, %54 : vector<8x16xf32>
    %56 = arith.addf %51, %55 : vector<8x16xf32>
    %57 = vector.extract_strided_slice %15 {offsets = [0, 4], sizes = [1, 16], strides = [1, 1]} : vector<8x20xf32> to vector<1x16xf32>
    %58 = vector.broadcast %8 : vector<8x1xf32> to vector<8x16xf32>
    %59 = vector.broadcast %57 : vector<1x16xf32> to vector<8x16xf32>
    %60 = arith.mulf %58, %59 : vector<8x16xf32>
    %61 = arith.addf %56, %60 : vector<8x16xf32>
    %62 = vector.extract_strided_slice %15 {offsets = [1, 4], sizes = [1, 16], strides = [1, 1]} : vector<8x20xf32> to vector<1x16xf32>
    %63 = vector.broadcast %9 : vector<8x1xf32> to vector<8x16xf32>
    %64 = vector.broadcast %62 : vector<1x16xf32> to vector<8x16xf32>
    %65 = arith.mulf %63, %64 : vector<8x16xf32>
    %66 = arith.addf %61, %65 : vector<8x16xf32>
    %67 = vector.extract_strided_slice %15 {offsets = [2, 4], sizes = [1, 16], strides = [1, 1]} : vector<8x20xf32> to vector<1x16xf32>
    %68 = vector.broadcast %10 : vector<8x1xf32> to vector<8x16xf32>
    %69 = vector.broadcast %67 : vector<1x16xf32> to vector<8x16xf32>
    %70 = arith.mulf %68, %69 : vector<8x16xf32>
    %71 = arith.addf %66, %70 : vector<8x16xf32>
    %72 = vector.extract_strided_slice %15 {offsets = [3, 4], sizes = [1, 16], strides = [1, 1]} : vector<8x20xf32> to vector<1x16xf32>
    %73 = vector.broadcast %11 : vector<8x1xf32> to vector<8x16xf32>
    %74 = vector.broadcast %72 : vector<1x16xf32> to vector<8x16xf32>
    %75 = arith.mulf %73, %74 : vector<8x16xf32>
    %76 = arith.addf %71, %75 : vector<8x16xf32>
    %77 = vector.broadcast %12 : vector<8x1xf32> to vector<8x16xf32>
    %78 = arith.addf %76, %77 : vector<8x16xf32>
    %c0_16 = arith.constant 0 : index
    %c0_17 = arith.constant 0 : index
    %79 = vector.load %arg3[%c0_16, %c0_17] : memref<16x16xf32, #tpu.memory_space<vmem>>, vector<8x16xf32>
    tpu.vector_store %arg3[%c0_16, %c0_17], %78 {strides = array<i32>} : memref<16x16xf32, #tpu.memory_space<vmem>>, vector<8x16xf32>,
    %cst_18 = arith.constant 0.000000e+00 : f32
    %80 = vector.broadcast %cst_18 : f32 to vector<8x16xf32>
    %81 = vector.extract_strided_slice %15 {offsets = [4, 0], sizes = [1, 16], strides = [1, 1]} : vector<8x20xf32> to vector<1x16xf32>
    %82 = vector.broadcast %0 : vector<8x1xf32> to vector<8x16xf32>
    %83 = vector.broadcast %81 : vector<1x16xf32> to vector<8x16xf32>
    %84 = arith.mulf %82, %83 : vector<8x16xf32>
    %85 = arith.addf %80, %84 : vector<8x16xf32>
    %86 = vector.extract_strided_slice %15 {offsets = [5, 0], sizes = [1, 16], strides = [1, 1]} : vector<8x20xf32> to vector<1x16xf32>
    %87 = vector.broadcast %1 : vector<8x1xf32> to vector<8x16xf32>
    %88 = vector.broadcast %86 : vector<1x16xf32> to vector<8x16xf32>
    %89 = arith.mulf %87, %88 : vector<8x16xf32>
    %90 = arith.addf %85, %89 : vector<8x16xf32>
    %91 = vector.extract_strided_slice %15 {offsets = [6, 0], sizes = [1, 16], strides = [1, 1]} : vector<8x20xf32> to vector<1x16xf32>
    %92 = vector.broadcast %2 : vector<8x1xf32> to vector<8x16xf32>
    %93 = vector.broadcast %91 : vector<1x16xf32> to vector<8x16xf32>
    %94 = arith.mulf %92, %93 : vector<8x16xf32>
    %95 = arith.addf %90, %94 : vector<8x16xf32>
    %96 = vector.extract_strided_slice %15 {offsets = [7, 0], sizes = [1, 16], strides = [1, 1]} : vector<8x20xf32> to vector<1x16xf32>
    %97 = vector.broadcast %3 : vector<8x1xf32> to vector<8x16xf32>
    %98 = vector.broadcast %96 : vector<1x16xf32> to vector<8x16xf32>
    %99 = arith.mulf %97, %98 : vector<8x16xf32>
    %100 = arith.addf %95, %99 : vector<8x16xf32>
    %101 = vector.extract_strided_slice %15 {offsets = [4, 2], sizes = [1, 16], strides = [1, 1]} : vector<8x20xf32> to vector<1x16xf32>
    %102 = vector.broadcast %4 : vector<8x1xf32> to vector<8x16xf32>
    %103 = vector.broadcast %101 : vector<1x16xf32> to vector<8x16xf32>
    %104 = arith.mulf %102, %103 : vector<8x16xf32>
    %105 = arith.addf %100, %104 : vector<8x16xf32>
    %106 = vector.extract_strided_slice %15 {offsets = [5, 2], sizes = [1, 16], strides = [1, 1]} : vector<8x20xf32> to vector<1x16xf32>
    %107 = vector.broadcast %5 : vector<8x1xf32> to vector<8x16xf32>
    %108 = vector.broadcast %106 : vector<1x16xf32> to vector<8x16xf32>
    %109 = arith.mulf %107, %108 : vector<8x16xf32>
    %110 = arith.addf %105, %109 : vector<8x16xf32>
    %111 = vector.extract_strided_slice %15 {offsets = [6, 2], sizes = [1, 16], strides = [1, 1]} : vector<8x20xf32> to vector<1x16xf32>
    %112 = vector.broadcast %6 : vector<8x1xf32> to vector<8x16xf32>
    %113 = vector.broadcast %111 : vector<1x16xf32> to vector<8x16xf32>
    %114 = arith.mulf %112, %113 : vector<8x16xf32>
    %115 = arith.addf %110, %114 : vector<8x16xf32>
    %116 = vector.extract_strided_slice %15 {offsets = [7, 2], sizes = [1, 16], strides = [1, 1]} : vector<8x20xf32> to vector<1x16xf32>
    %117 = vector.broadcast %7 : vector<8x1xf32> to vector<8x16xf32>
    %118 = vector.broadcast %116 : vector<1x16xf32> to vector<8x16xf32>
    %119 = arith.mulf %117, %118 : vector<8x16xf32>
    %120 = arith.addf %115, %119 : vector<8x16xf32>
    %121 = vector.extract_strided_slice %15 {offsets = [4, 4], sizes = [1, 16], strides = [1, 1]} : vector<8x20xf32> to vector<1x16xf32>
    %122 = vector.broadcast %8 : vector<8x1xf32> to vector<8x16xf32>
    %123 = vector.broadcast %121 : vector<1x16xf32> to vector<8x16xf32>
    %124 = arith.mulf %122, %123 : vector<8x16xf32>
    %125 = arith.addf %120, %124 : vector<8x16xf32>
    %126 = vector.extract_strided_slice %15 {offsets = [5, 4], sizes = [1, 16], strides = [1, 1]} : vector<8x20xf32> to vector<1x16xf32>
    %127 = vector.broadcast %9 : vector<8x1xf32> to vector<8x16xf32>
    %128 = vector.broadcast %126 : vector<1x16xf32> to vector<8x16xf32>
    %129 = arith.mulf %127, %128 : vector<8x16xf32>
    %130 = arith.addf %125, %129 : vector<8x16xf32>
    %131 = vector.extract_strided_slice %15 {offsets = [6, 4], sizes = [1, 16], strides = [1, 1]} : vector<8x20xf32> to vector<1x16xf32>
    %132 = vector.broadcast %10 : vector<8x1xf32> to vector<8x16xf32>
    %133 = vector.broadcast %131 : vector<1x16xf32> to vector<8x16xf32>
    %134 = arith.mulf %132, %133 : vector<8x16xf32>
    %135 = arith.addf %130, %134 : vector<8x16xf32>
    %136 = vector.extract_strided_slice %15 {offsets = [7, 4], sizes = [1, 16], strides = [1, 1]} : vector<8x20xf32> to vector<1x16xf32>
    %137 = vector.broadcast %11 : vector<8x1xf32> to vector<8x16xf32>
    %138 = vector.broadcast %136 : vector<1x16xf32> to vector<8x16xf32>
    %139 = arith.mulf %137, %138 : vector<8x16xf32>
    %140 = arith.addf %135, %139 : vector<8x16xf32>
    %141 = vector.broadcast %12 : vector<8x1xf32> to vector<8x16xf32>
    %142 = arith.addf %140, %141 : vector<8x16xf32>
    %c8_19 = arith.constant 8 : index
    %c0_20 = arith.constant 0 : index
    %143 = vector.load %arg3[%c8_19, %c0_20] : memref<16x16xf32, #tpu.memory_space<vmem>>, vector<8x16xf32>
    tpu.vector_store %arg3[%c8_19, %c0_20], %142 {strides = array<i32>} : memref<16x16xf32, #tpu.memory_space<vmem>>, vector<8x16xf32>,
    return
  }
  func.func @transform_0(%arg0: i32) -> (i32, i32) {
    %c0_i32 = arith.constant 0 : i32
    %c0_i32_0 = arith.constant 0 : i32
    return %c0_i32, %arg0 : i32, i32
  }
  func.func @transform_1(%arg0: i32) -> (i32, i32) {
    %c0_i32 = arith.constant 0 : i32
    %c0_i32_0 = arith.constant 0 : i32
    %c0_i32_1 = arith.constant 0 : i32
    return %c0_i32, %c0_i32_0 : i32, i32
  }
  func.func @transform_2(%arg0: i32) -> (i32, i32) {
    %c0_i32 = arith.constant 0 : i32
    %c0_i32_0 = arith.constant 0 : i32
    return %c0_i32, %arg0 : i32, i32
  }
}

</mosaic_0001>

<llo_original>
// kernel: tpu_custom_call.1
$region0: #{tpu_custom_call.1}
  #allocation0 [shape = 'u32[]', space=smem, size = 0x4, offset = 0x4, fixed_abs, tag = 'smem constant byte address 0x4 - core index']
  #allocation1 [shape = 'u32[144,128]{1,0:T(1,128)}', space=vmem, size = 0x12000, scoped, tag = 'internal scratch']
  %s0 = inlined_call_operand.hbm [shape: f32[8,16], index: 0, kind: input, shape index: {}]
  %s1 = inlined_call_operand.hbm [shape: f32[8,13], index: 1, kind: input, shape index: {}]
  %s2 = inlined_call_operand.hbm [shape: f32[16,16], index: 2, kind: output, shape index: {}]
  %s3 = sld [smem:[#allocation0]]
  $region26: #{tpu_custom_call.1} parent=0
    _
  %s5 = ssub.s32 1, %s3
  %s6 = scalar_select 0, %s5, %s3
  $region1: #{tpu_custom_call.1} parent=0
    #allocation2 [shape = 'u8[4096]{0}', space=vmem, size = 0x1000, scoped, tag = 'input window, operand 0, single buffered']
    #allocation3 [shape = 's32[1]{0}', space=sflag, size = 0x4, scoped, tag = 'scoped memory for tpu_custom_call.1']
    #allocation4 [shape = 's32[1]{0}', space=sflag, size = 0x4, scoped, tag = 'scoped memory for tpu_custom_call.1']
    #allocation5 [shape = 'u8[4096]{0}', space=vmem, size = 0x1000, scoped, tag = 'input window, operand 1, single buffered']
    #allocation6 [shape = 's32[1]{0}', space=sflag, size = 0x4, scoped, tag = 'scoped memory for tpu_custom_call.1']
    #allocation7 [shape = 'u8[8192]{0}', space=vmem, size = 0x2000, scoped, tag = 'output window, operand 0, single buffered']
    %7 = vsyncpa [#allocation3], 0
    %8 = vsyncpa [#allocation6], 0
    %9 = vsyncpa [#allocation4], 0
    // Predicated region
    $region2: #{tpu_custom_call.1} parent=1 // pred_check
      _
    $region3: #{tpu_custom_call.1} parent=1 // pred_check_branch
      %11 = sbr.rel (0) target = $region5
    $region4: #{tpu_custom_call.1} parent=1 // pred_region
      %s13 = ssub.s32 128, 128
      %14 = vsyncadd [#allocation3], %s13
      %s16 = sshll.u32 [#allocation2], 4
      %s17 = int_to_ptr.vmem [resolvable:$true] %s16
      %19 = dma.hbm_to_vmem [thread:$0]  %s0, 128, %s17, [#allocation3]
    $region5: #{tpu_custom_call.1} parent=1 // pred_fallthru
      _
    // Predicated region
    $region6: #{tpu_custom_call.1} parent=1 // pred_check
      _
    $region7: #{tpu_custom_call.1} parent=1 // pred_check_branch
      %21 = sbr.rel (0) target = $region9
    $region8: #{tpu_custom_call.1} parent=1 // pred_region
      %s23 = ssub.s32 128, 128
      %24 = vsyncadd [#allocation6], %s23
      %s26 = sshll.u32 [#allocation5], 4
      %s27 = int_to_ptr.vmem [resolvable:$true] %s26
      %29 = dma.hbm_to_vmem [thread:$0]  %s1, 128, %s27, [#allocation6]
    $region9: #{tpu_custom_call.1} parent=1 // pred_fallthru
      _
    // Predicated region
    $region10: #{tpu_custom_call.1} parent=1 // pred_check
      _
    $region11: #{tpu_custom_call.1} parent=1 // pred_check_branch
      %31 = sbr.rel (0) target = $region13
    $region12: #{tpu_custom_call.1} parent=1 // pred_region
      %32 = dma.done [#allocation3], 128
    $region13: #{tpu_custom_call.1} parent=1 // pred_fallthru
      _
    // Predicated region
    $region14: #{tpu_custom_call.1} parent=1 // pred_check
      _
    $region15: #{tpu_custom_call.1} parent=1 // pred_check_branch
      %34 = sbr.rel (0) target = $region17
    $region16: #{tpu_custom_call.1} parent=1 // pred_region
      %35 = dma.done [#allocation6], 128
    $region17: #{tpu_custom_call.1} parent=1 // pred_fallthru
      _
    %v36 = vld [vmem:[#allocation5] sm:$0xff]
    %v37 = vld [vmem:[#allocation2] sm:$0xff]
    %39 = vrot.lane.b32.xlu0 %v37, 4
    %v40 = vpop.permute.xlu0 %39
    %vm42 = vcmask 31744
    %v43 = vsel %vm42, 0.0, %v40
    %45 = vset.pattern.permute.xlu0 0
    %46 = vperm.xlu0 %45, %v36
    %v47 = vpop.permute.xlu0 %46
    %v49 = vlaneseq
    %v50 = vshrl.u32 %v49, 7
    %v51 = vsub.s32 0, %v50
    %v52 = vrot.slane %v43, %v51
    %v53 = vmul.f32 %v47, %v52
    %v54 = vadd.f32 %v53, 0.0
    %55 = vset.pattern.permute.xlu0 1
    %56 = vperm.xlu0 %55, %v36
    %v57 = vpop.permute.xlu0 %56
    %v59 = vlaneseq
    %v60 = vshrl.u32 %v59, 7
    %v61 = vsub.s32 1, %v60
    %v62 = vrot.slane %v43, %v61
    %v63 = vmul.f32 %v57, %v62
    %v64 = vadd.f32 %v54, %v63
    %65 = vset.pattern.permute.xlu0 2
    %66 = vperm.xlu0 %65, %v36
    %v67 = vpop.permute.xlu0 %66
    %v69 = vlaneseq
    %v70 = vshrl.u32 %v69, 7
    %v71 = vsub.s32 2, %v70
    %v72 = vrot.slane %v43, %v71
    %v73 = vmul.f32 %v67, %v72
    %v74 = vadd.f32 %v64, %v73
    %75 = vset.pattern.permute.xlu0 3
    %76 = vperm.xlu0 %75, %v36
    %v77 = vpop.permute.xlu0 %76
    %v79 = vlaneseq
    %v80 = vshrl.u32 %v79, 7
    %v81 = vsub.s32 3, %v80
    %v82 = vrot.slane %v43, %v81
    %v83 = vmul.f32 %v77, %v82
    %v84 = vadd.f32 %v74, %v83
    %85 = vset.pattern.permute.xlu0 4
    %86 = vperm.xlu0 %85, %v36
    %v87 = vpop.permute.xlu0 %86
    %v89 = vmul.f32 %v87, %v52
    %91 = vrot.lane.b32.xlu0 %v89, 126
    %v92 = vpop.permute.xlu0 %91
    %v94 = vadd.f32 %v84, %v92
    %95 = vset.pattern.permute.xlu0 5
    %96 = vperm.xlu0 %95, %v36
    %v97 = vpop.permute.xlu0 %96
    %v99 = vmul.f32 %v97, %v62
    %101 = vrot.lane.b32.xlu0 %v99, 126
    %v102 = vpop.permute.xlu0 %101
    %v104 = vadd.f32 %v94, %v102
    %105 = vset.pattern.permute.xlu0 6
    %106 = vperm.xlu0 %105, %v36
    %v107 = vpop.permute.xlu0 %106
    %v109 = vmul.f32 %v107, %v72
    %111 = vrot.lane.b32.xlu0 %v109, 126
    %v112 = vpop.permute.xlu0 %111
    %v114 = vadd.f32 %v104, %v112
    %115 = vset.pattern.permute.xlu0 7
    %116 = vperm.xlu0 %115, %v36
    %v117 = vpop.permute.xlu0 %116
    %v119 = vmul.f32 %v117, %v82
    %121 = vrot.lane.b32.xlu0 %v119, 126
    %v122 = vpop.permute.xlu0 %121
    %v124 = vadd.f32 %v114, %v122
    %125 = vset.pattern.permute.xlu0 8
    %126 = vperm.xlu0 %125, %v36
    %v127 = vpop.permute.xlu0 %126
    %v129 = vmul.f32 %v127, %v52
    %131 = vrot.lane.b32.xlu0 %v129, 124
    %v132 = vpop.permute.xlu0 %131
    %v134 = vadd.f32 %v124, %v132
    %135 = vset.pattern.permute.xlu0 9
    %136 = vperm.xlu0 %135, %v36
    %v137 = vpop.permute.xlu0 %136
    %v139 = vmul.f32 %v137, %v62
    %141 = vrot.lane.b32.xlu0 %v139, 124
    %v142 = vpop.permute.xlu0 %141
    %v144 = vadd.f32 %v134, %v142
    %145 = vset.pattern.permute.xlu0 10
    %146 = vperm.xlu0 %145, %v36
    %v147 = vpop.permute.xlu0 %146
    %v149 = vmul.f32 %v147, %v72
    %151 = vrot.lane.b32.xlu0 %v149, 124
    %v152 = vpop.permute.xlu0 %151
    %v154 = vadd.f32 %v144, %v152
    %155 = vset.pattern.permute.xlu0 11
    %156 = vperm.xlu0 %155, %v36
    %v157 = vpop.permute.xlu0 %156
    %v159 = vmul.f32 %v157, %v82
    %161 = vrot.lane.b32.xlu0 %v159, 124
    %v162 = vpop.permute.xlu0 %161
    %v164 = vadd.f32 %v154, %v162
    %165 = vset.pattern.permute.xlu0 12
    %166 = vperm.xlu0 %165, %v36
    %v167 = vpop.permute.xlu0 %166
    %v169 = vadd.f32 %v164, %v167
    %vm170 = vcmask 130048
    %171 = vst.msk [vmem:[#allocation7] sm:$0xff] %vm170, %v169
    %v172 = vlaneseq
    %v173 = vshrl.u32 %v172, 7
    %v174 = vsub.s32 4, %v173
    %v175 = vrot.slane %v43, %v174
    %v176 = vmul.f32 %v47, %v175
    %v177 = vadd.f32 %v176, 0.0
    %v178 = vlaneseq
    %v179 = vshrl.u32 %v178, 7
    %v180 = vsub.s32 5, %v179
    %v181 = vrot.slane %v43, %v180
    %v182 = vmul.f32 %v57, %v181
    %v183 = vadd.f32 %v177, %v182
    %v184 = vlaneseq
    %v185 = vshrl.u32 %v184, 7
    %v186 = vsub.s32 6, %v185
    %v187 = vrot.slane %v43, %v186
    %v188 = vmul.f32 %v67, %v187
    %v189 = vadd.f32 %v183, %v188
    %v190 = vlaneseq
    %v191 = vshrl.u32 %v190, 7
    %v192 = vsub.s32 7, %v191
    %v193 = vrot.slane %v43, %v192
    %v194 = vmul.f32 %v77, %v193
    %v195 = vadd.f32 %v189, %v194
    %v196 = vmul.f32 %v87, %v175
    %198 = vrot.lane.b32.xlu0 %v196, 126
    %v199 = vpop.permute.xlu0 %198
    %v201 = vadd.f32 %v195, %v199
    %v202 = vmul.f32 %v97, %v181
    %204 = vrot.lane.b32.xlu0 %v202, 126
    %v205 = vpop.permute.xlu0 %204
    %v207 = vadd.f32 %v201, %v205
    %v208 = vmul.f32 %v107, %v187
    %210 = vrot.lane.b32.xlu0 %v208, 126
    %v211 = vpop.permute.xlu0 %210
    %v213 = vadd.f32 %v207, %v211
    %v214 = vmul.f32 %v117, %v193
    %216 = vrot.lane.b32.xlu0 %v214, 126
    %v217 = vpop.permute.xlu0 %216
    %v219 = vadd.f32 %v213, %v217
    %v220 = vmul.f32 %v127, %v175
    %222 = vrot.lane.b32.xlu0 %v220, 124
    %v223 = vpop.permute.xlu0 %222
    %v225 = vadd.f32 %v219, %v223
    %v226 = vmul.f32 %v137, %v181
    %228 = vrot.lane.b32.xlu0 %v226, 124
    %v229 = vpop.permute.xlu0 %228
    %v231 = vadd.f32 %v225, %v229
    %v232 = vmul.f32 %v147, %v187
    %234 = vrot.lane.b32.xlu0 %v232, 124
    %v235 = vpop.permute.xlu0 %234
    %v237 = vadd.f32 %v231, %v235
    %v238 = vmul.f32 %v157, %v193
    %240 = vrot.lane.b32.xlu0 %v238, 124
    %v241 = vpop.permute.xlu0 %240
    %v243 = vadd.f32 %v237, %v241
    %v244 = vadd.f32 %v243, %v167
    %245 = vst.msk [vmem:[#allocation7 + $0x8] sm:$0xff] %vm170, %v244
    // Predicated region
    $region18: #{tpu_custom_call.1} parent=1 // pred_check
      _
    $region19: #{tpu_custom_call.1} parent=1 // pred_check_branch
      %247 = sbr.rel (0) target = $region21
    $region20: #{tpu_custom_call.1} parent=1 // pred_region
      %s249 = ssub.s32 256, 256
      %250 = vsyncadd [#allocation4], %s249
      %s251 = sshll.u32 [#allocation7], 4
      %s252 = int_to_ptr.vmem [resolvable:$true] %s251
      %257 = dma.vmem_to_hbm [thread:$0]  %s252, 256, %s2, [#allocation4], 128, 128, 8
    $region21: #{tpu_custom_call.1} parent=1 // pred_fallthru
      _
    // Predicated region
    $region22: #{tpu_custom_call.1} parent=1 // pred_check
      _
    $region23: #{tpu_custom_call.1} parent=1 // pred_check_branch
      %259 = sbr.rel (0) target = $region25
    $region24: #{tpu_custom_call.1} parent=1 // pred_region
      %260 = dma.done [#allocation4], 256
    $region25: #{tpu_custom_call.1} parent=1 // pred_fallthru
      _
    %261 = vsyncpa [#allocation3], 1
    %262 = vsyncpa [#allocation6], 1
    %263 = vsyncpa [#allocation4], 1

</llo_original>
